<compile_context>
chip_gen: v6e
topology: v6e:2x2x1
jax: 0.10.0
libtpu: 0.0.40
codegen_flags: <defaults>
</compile_context>

<pallas_src>
import functools

import jax
import jax.numpy as jnp
from jax.experimental import pallas as pl
from jax.experimental.pallas import tpu as pltpu


def _logreg_kernel(x_ref, w_ref, b_ref, o_ref):
    # x_ref: [TB, F]  f32, natural row-major batch tile
    # w_ref: [8, F]   f32, row 0 is the real weight, rows 1-7 are zero (sublane pad)
    # b_ref: [1]      f32, bias scalar in SMEM
    # o_ref: [1, TB]  f32, lane-dense probabilities
    logits = jax.lax.dot_general(
        w_ref[...], x_ref[...],
        dimension_numbers=(((1,), (1,)), ((), ())),   # contract both on F (q @ k.T style)
        precision=jax.lax.Precision.HIGHEST,
        preferred_element_type=jnp.float32,
    )                                                  # [8, TB], f32 accumulation on MXU
    z = logits[0:1, :] + b_ref[0]                      # [1, TB]
    o_ref[...] = 1.0 / (1.0 + jnp.exp(-z))             # sigmoid on VPU/EUP


def _round_up(x, m):
    return ((x + m - 1) // m) * m


@jax.jit
def logistic_regression_forward(x, weight, bias):
    """x: [N, F], weight: [1, F] (PyTorch Linear layout), bias: [1]. Returns [N, 1] f32."""
    x = x.astype(jnp.float32)
    N, F = x.shape

    # ---- tiling (static at trace time) ---------------------------------------
    lane_f = _round_up(F, 128)          # minor-dim (lane) padding of f32 rows in HBM/VMEM
    row_bytes = lane_f * 4
    try:
        vmem_cap = int(pltpu.get_tpu_info().vmem_capacity_bytes)
    except Exception:                    # pragma: no cover - conservative fallback
        vmem_cap = 64 * 1024 * 1024
    # Per-X-buffer byte target (Pallas double-buffers): ~10 MiB on v7x, ~21 MiB on v5e/v6e.
    x_buf_target = max(2 << 20, vmem_cap // 6)

    tile_b = max(128, (x_buf_target // row_bytes) // 128 * 128)          # byte-targeted rows
    tile_b = min(tile_b, max(128, _round_up(pl.cdiv(N, 2), 128)))        # >=2 grid steps on big N
    tile_b = min(tile_b, _round_up(N, 8))                                # never exceed batch
    while tile_b > 8 and tile_b * row_bytes > x_buf_target:              # very large F fallback
        tile_b = max(8, (tile_b // 2) // 8 * 8)
    grid_b = pl.cdiv(N, tile_b)

    # ---- operand preparation (only the tiny weight/bias are touched) ----------
    w8 = jnp.pad(weight.astype(jnp.float32), ((0, 7), (0, 0)))           # [8, F], rows 1-7 zero
    b = bias.reshape(1).astype(jnp.float32)                              # [1] scalar in SMEM

    # ---- VMEM budget from actual (padded) block sizes --------------------------
    x_buf = tile_b * row_bytes                 # [TB, F] block, lanes padded to 128
    out_buf = 8 * tile_b * 4                   # [1, TB] block, sublanes padded to 8
    w_buf = 8 * lane_f * 4                     # [8, F] weight block
    vmem_need = 2 * (x_buf + out_buf + w_buf)  # double-buffered by the pipeline
    vmem_limit = min(max(vmem_need + (2 << 20), 16 << 20), vmem_cap)
    vmem_limit = max(vmem_limit, vmem_need + (1 << 20))   # never declare less than needed

    out = pl.pallas_call(
        _logreg_kernel,
        out_shape=jax.ShapeDtypeStruct((grid_b, tile_b), jnp.float32),
        grid_spec=pltpu.PrefetchScalarGridSpec(
            num_scalar_prefetch=0,
            grid=(grid_b,),
            in_specs=[
                pl.BlockSpec((tile_b, F), lambda i: (i, 0)),              # batch-tiled X, natural layout
                pl.BlockSpec((8, F), lambda i: (0, 0)),                   # resident weight (constant index)
                pl.BlockSpec(memory_space=pltpu.MemorySpace.SMEM),        # bias scalar in SMEM
            ],
            out_specs=pl.BlockSpec((1, tile_b), lambda i: (i, 0)),        # lane-dense output slab
        ),
        compiler_params=pltpu.CompilerParams(
            dimension_semantics=("parallel",),
            vmem_limit_bytes=int(vmem_limit),
        ),
        cost_estimate=pl.CostEstimate(
            flops=2 * N * F,
            transcendentals=N,
            bytes_accessed=(N * F + N + 8 * F) * 4,
        ),
    )(x, w8, b)

    # Padded positions of the last (partial) batch tile are garbage; slice them off.
    return out.reshape(-1)[:N].reshape(N, 1)


if __name__ == "__main__":
    # Small, deterministic example: batch=8, num_features=32
    batch, num_features = 8, 32
    key = jax.random.PRNGKey(0)
    x = jax.random.normal(key, (batch, num_features), dtype=jnp.float32)

    # Module __init__ zero-initializes weight and bias (weight.data.zero_(), bias.data.zero_())
    weight = jnp.zeros((1, num_features), dtype=jnp.float32)  # PyTorch Linear weight layout
    bias = jnp.zeros((1,), dtype=jnp.float32)

    probas = jax.block_until_ready(logistic_regression_forward(x, weight, bias))

    # Reference check in plain JAX (zero weights -> exactly 0.5 everywhere)
    ref = jax.nn.sigmoid(x @ weight.T + bias)
    assert probas.shape == (batch, 1)
    assert jnp.allclose(probas, ref, atol=1e-5), (probas, ref)

    # Nonzero-weight sanity check of the matmul/bias/sigmoid path (f32 end-to-end)
    k1, _ = jax.random.split(key)
    w2 = 0.1 * jax.random.normal(k1, (1, num_features), dtype=jnp.float32)
    b2 = jnp.array([0.25], dtype=jnp.float32)
    p2 = jax.block_until_ready(logistic_regression_forward(x, w2, b2))
    ref2 = jax.nn.sigmoid(x @ w2.T + b2)
    assert p2.shape == (batch, 1)
    assert jnp.allclose(p2, ref2, atol=1e-3), (p2, ref2)

    print("KERNEL_OK")
</pallas_src>

<mosaic_0001>
module attributes {stable_mosaic.version = 11 : i64} {
  func.func @_logreg_kernel(%arg0: i32, %arg1: memref<8x32xf32, #tpu.memory_space<vmem>>, %arg2: memref<8x32xf32, #tpu.memory_space<vmem>>, %arg3: memref<1xf32, #tpu.memory_space<smem>>, %arg4: memref<1x8xf32, #tpu.memory_space<vmem>>) attributes {dimension_semantics = [#tpu.dimension_semantics<parallel>], iteration_bounds = array<i64: 1>, scalar_prefetch = 0 : i64, scratch_operands = 0 : i64, tpu.core_type = #tpu.core_type<tc>, window_params = [{transform_indices = @transform_0, window_bounds = array<i64: 8, 32>}, {pipeline_mode = #tpu.pipeline_mode<synchronous>, transform_indices = @transform_1, window_bounds = array<i64: 8, 32>}, {transform_indices = @transform_2, window_bounds = array<i64: 1>}, {transform_indices = @transform_3, window_bounds = array<i64: 1, 8>}]} {
    %c0 = arith.constant 0 : index
    %c0_0 = arith.constant 0 : index
    %0 = vector.load %arg2[%c0, %c0_0] : memref<8x32xf32, #tpu.memory_space<vmem>>, vector<8x32xf32>
    %c0_1 = arith.constant 0 : index
    %c0_2 = arith.constant 0 : index
    %1 = vector.load %arg1[%c0_1, %c0_2] : memref<8x32xf32, #tpu.memory_space<vmem>>, vector<8x32xf32>
    %cst = arith.constant dense<0.000000e+00> : vector<8x8xf32>
    %2 = tpu.matmul %0, %1, %cst {dimension_numbers = #tpu.dot_dimension_numbers<[1], [1], [0], [0], [0, 0, 1, 0], [], []>, precision = #tpu.contract_precision<fp32>} : vector<8x32xf32>, vector<8x32xf32>, vector<8x8xf32> -> vector<8x8xf32>
    %3 = vector.extract_strided_slice %2 {offsets = [0, 0], sizes = [1, 8], strides = [1, 1]} : vector<8x8xf32> to vector<1x8xf32>
    %c0_3 = arith.constant 0 : index
    %4 = memref.load %arg3[%c0_3] : memref<1xf32, #tpu.memory_space<smem>>
    %5 = vector.broadcast %4 : f32 to vector<1x8xf32>
    %6 = arith.addf %3, %5 : vector<1x8xf32>
    %cst_4 = arith.constant 0.000000e+00 : f32
    %7 = vector.broadcast %cst_4 : f32 to vector<1x8xf32>
    %8 = arith.subf %7, %6 : vector<1x8xf32>
    %9 = math.exp %8 : vector<1x8xf32>
    %cst_5 = arith.constant 1.000000e+00 : f32
    %10 = vector.broadcast %cst_5 : f32 to vector<1x8xf32>
    %11 = arith.addf %10, %9 : vector<1x8xf32>
    %cst_6 = arith.constant 1.000000e+00 : f32
    %12 = vector.broadcast %cst_6 : f32 to vector<1x8xf32>
    %13 = arith.divf %12, %11 : vector<1x8xf32>
    %c0_7 = arith.constant 0 : index
    %c0_8 = arith.constant 0 : index
    %14 = vector.load %arg4[%c0_7, %c0_8] : memref<1x8xf32, #tpu.memory_space<vmem>>, vector<1x8xf32>
    tpu.vector_store %arg4[%c0_7, %c0_8], %13 {strides = array<i32>} : memref<1x8xf32, #tpu.memory_space<vmem>>, vector<1x8xf32>,
    return
  }
  func.func @transform_0(%arg0: i32) -> (i32, i32) {
    %c0_i32 = arith.constant 0 : i32
    %c0_i32_0 = arith.constant 0 : i32
    return %arg0, %c0_i32 : i32, i32
  }
  func.func @transform_1(%arg0: i32) -> (i32, i32) {
    %c0_i32 = arith.constant 0 : i32
    %c0_i32_0 = arith.constant 0 : i32
    %c0_i32_1 = arith.constant 0 : i32
    return %c0_i32, %c0_i32_0 : i32, i32
  }
  func.func @transform_2(%arg0: i32) -> i32 {
    %c0_i32 = arith.constant 0 : i32
    %c0_i32_0 = arith.constant 0 : i32
    return %c0_i32 : i32
  }
  func.func @transform_3(%arg0: i32) -> (i32, i32) {
    %c0_i32 = arith.constant 0 : i32
    %c0_i32_0 = arith.constant 0 : i32
    return %arg0, %c0_i32 : i32, i32
  }
}

</mosaic_0001>

<llo_original>
// kernel: logistic_regression_forward.1
$region0: #{logistic_regression_forward.1}
  #allocation0 [shape = 'u32[]', space=smem, size = 0x4, offset = 0x4, fixed_abs, tag = 'smem constant byte address 0x4 - core index']
  #allocation1 [shape = 'u32[144,128]{1,0:T(1,128)}', space=vmem, size = 0x12000, scoped, tag = 'internal scratch']
  #allocation2 [shape = 'f32[1]{0:T(128)S(6)}', space=smem, size = 0x200, scoped, tag = 'scoped memory for logistic_regression_forward.1']
  %s0 = inlined_call_operand.vmem [shape: f32[8,32], index: 0, kind: input, shape index: {}]
  %s1 = inlined_call_operand.vmem [shape: f32[8,32], index: 1, kind: input, shape index: {}]
  %s2 = inlined_call_operand.<no memory space> [shape: f32[1], index: 2, kind: input, shape index: {}]
  %s3 = inlined_call_operand.hbm [shape: f32[1,8], index: 3, kind: output, shape index: {}]
  %s4 = sld [smem:[#allocation0]]
  $region22: #{logistic_regression_forward.1} parent=0
    _
  %s6 = ssub.s32 1, %s4
  %s7 = scalar_select 0, %s6, %s4
  %8 = sst [smem:[#allocation2]] %s2
  $region1: #{logistic_regression_forward.1} parent=0
    #allocation3 [shape = 'u8[512]{0}', space=vmem, size = 0x400, scoped, tag = 'output window, operand 0, single buffered']
    #allocation4 [shape = 's32[1]{0}', space=sflag, size = 0x4, scoped, tag = 'scoped memory for logistic_regression_forward.1']
    %9 = vsyncpa [#allocation4], 0
    // Predicated region
    $region2: #{logistic_regression_forward.1} parent=1 // pred_check
      _
    $region3: #{logistic_regression_forward.1} parent=1 // pred_check_branch
      %11 = sbr.rel (0) target = $region5
    $region4: #{logistic_regression_forward.1} parent=1 // pred_region
      _
    $region5: #{logistic_regression_forward.1} parent=1 // pred_fallthru
      _
    // Predicated region
    $region6: #{logistic_regression_forward.1} parent=1 // pred_check
      _
    $region7: #{logistic_regression_forward.1} parent=1 // pred_check_branch
      %13 = sbr.rel (0) target = $region9
    $region8: #{logistic_regression_forward.1} parent=1 // pred_region
      _
    $region9: #{logistic_regression_forward.1} parent=1 // pred_fallthru
      _
    // Predicated region
    $region10: #{logistic_regression_forward.1} parent=1 // pred_check
      _
    $region11: #{logistic_regression_forward.1} parent=1 // pred_check_branch
      %15 = sbr.rel (0) target = $region13
    $region12: #{logistic_regression_forward.1} parent=1 // pred_region
      _
    $region13: #{logistic_regression_forward.1} parent=1 // pred_fallthru
      _
    %v16 = vld [vmem:[%s1] sm:$0xff]
    %v17 = vld [vmem:[%s0] sm:$0xff]
    %vm18 = vcmask 261120
    %v20 = vsel %vm18, %v16, 0
    %v23 = vsel %vm18, %v17, 0
    %25 = vmatprep.subr.mxu0 0.0
    %26 = vmatpush1.xpose.msra.mxu0 0.0
    %27 = vmatprep.subr.mxu0 0.0
    %28 = vmatpush1.xpose.msra.mxu0 0.0
    %29 = vmatprep.subr.mxu0 0.0
    %30 = vmatpush1.xpose.msra.mxu0 0.0
    %31 = vmatprep.subr.mxu0 0.0
    %32 = vmatpush1.xpose.msra.mxu0 0.0
    %33 = vmatprep.subr.mxu0 0.0
    %34 = vmatpush1.xpose.msra.mxu0 0.0
    %35 = vmatprep.subr.mxu0 0.0
    %36 = vmatpush1.xpose.msra.mxu0 0.0
    %37 = vmatprep.subr.mxu0 0.0
    %38 = vmatpush1.xpose.msra.mxu0 0.0
    %39 = vmatprep.subr.mxu0 0.0
    %40 = vmatpush1.xpose.msra.mxu0 0.0
    %41 = vmatprep.subr.mxu0 0.0
    %42 = vmatpush1.xpose.msra.mxu0 0.0
    %43 = vmatprep.subr.mxu0 0.0
    %44 = vmatpush1.xpose.msra.mxu0 0.0
    %45 = vmatprep.subr.mxu0 0.0
    %46 = vmatpush1.xpose.msra.mxu0 0.0
    %47 = vmatprep.subr.mxu0 0.0
    %48 = vmatpush1.xpose.msra.mxu0 0.0
    %49 = vmatprep.subr.mxu0 0.0
    %50 = vmatpush1.xpose.msra.mxu0 0.0
    %51 = vmatprep.subr.mxu0 0.0
    %52 = vmatpush1.xpose.msra.mxu0 0.0
    %53 = vmatprep.subr.mxu0 0.0
    %54 = vmatpush1.xpose.msra.mxu0 0.0
    %55 = vmatprep.subr.mxu0 0.0
    %v56 = vand.u32 %v23, 4294901760
    %57 = vmatpush1.xpose.msra.mxu0 %v56
    %58 = vmatprep.subr.mxu0 0.0
    %59 = vmatpush2.xpose.msra.mxu0 0.0
    %60 = vmatprep.subr.mxu0 0.0
    %61 = vmatpush2.xpose.msra.mxu0 0.0
    %62 = vmatprep.subr.mxu0 0.0
    %63 = vmatpush2.xpose.msra.mxu0 0.0
    %64 = vmatprep.subr.mxu0 0.0
    %65 = vmatpush2.xpose.msra.mxu0 0.0
    %66 = vmatprep.subr.mxu0 0.0
    %67 = vmatpush2.xpose.msra.mxu0 0.0
    %68 = vmatprep.subr.mxu0 0.0
    %69 = vmatpush2.xpose.msra.mxu0 0.0
    %70 = vmatprep.subr.mxu0 0.0
    %71 = vmatpush2.xpose.msra.mxu0 0.0
    %72 = vmatprep.subr.mxu0 0.0
    %73 = vmatpush2.xpose.msra.mxu0 0.0
    %74 = vmatprep.subr.mxu0 0.0
    %75 = vmatpush2.xpose.msra.mxu0 0.0
    %76 = vmatprep.subr.mxu0 0.0
    %77 = vmatpush2.xpose.msra.mxu0 0.0
    %78 = vmatprep.subr.mxu0 0.0
    %79 = vmatpush2.xpose.msra.mxu0 0.0
    %80 = vmatprep.subr.mxu0 0.0
    %81 = vmatpush2.xpose.msra.mxu0 0.0
    %82 = vmatprep.subr.mxu0 0.0
    %83 = vmatpush2.xpose.msra.mxu0 0.0
    %84 = vmatprep.subr.mxu0 0.0
    %85 = vmatpush2.xpose.msra.mxu0 0.0
    %86 = vmatprep.subr.mxu0 0.0
    %87 = vmatpush2.xpose.msra.mxu0 0.0
    %88 = vmatprep.subr.mxu0 0.0
    %89 = vmatpush2.xpose.msra.mxu0 0.0
    %90 = vmatprep.mubr.f32.mxu0 0.0
    %v91 = vand.u32 %v20, 4294901760
    %v92 = vsub.f32 %v20, %v91
    %v93 = vand.u32 %v92, 4294901760
    %v94 = vsub.f32 %v92, %v93
    %v95 = vand.u32 %v94, 4294901760
    %96 = vmatmul.mubr.f32.gmra.mxu0 %v95
    %v97 = vpop.f32.mrf.mxu0
    %v98 = vadd.f32 0.0, %v97
    %v99 = vpop.f32.mrf.mxu0
    %100 = vdwg.mxu0
    %101 = vmatprep.subr.mxu0 0.0
    %102 = vmatpush1.xpose.msra.mxu0 0.0
    %103 = vmatprep.subr.mxu0 0.0
    %104 = vmatpush1.xpose.msra.mxu0 0.0
    %105 = vmatprep.subr.mxu0 0.0
    %106 = vmatpush1.xpose.msra.mxu0 0.0
    %107 = vmatprep.subr.mxu0 0.0
    %108 = vmatpush1.xpose.msra.mxu0 0.0
    %109 = vmatprep.subr.mxu0 0.0
    %110 = vmatpush1.xpose.msra.mxu0 0.0
    %111 = vmatprep.subr.mxu0 0.0
    %112 = vmatpush1.xpose.msra.mxu0 0.0
    %113 = vmatprep.subr.mxu0 0.0
    %114 = vmatpush1.xpose.msra.mxu0 0.0
    %115 = vmatprep.subr.mxu0 0.0
    %116 = vmatpush1.xpose.msra.mxu0 0.0
    %117 = vmatprep.subr.mxu0 0.0
    %118 = vmatpush1.xpose.msra.mxu0 0.0
    %119 = vmatprep.subr.mxu0 0.0
    %120 = vmatpush1.xpose.msra.mxu0 0.0
    %121 = vmatprep.subr.mxu0 0.0
    %122 = vmatpush1.xpose.msra.mxu0 0.0
    %123 = vmatprep.subr.mxu0 0.0
    %124 = vmatpush1.xpose.msra.mxu0 0.0
    %125 = vmatprep.subr.mxu0 0.0
    %126 = vmatpush1.xpose.msra.mxu0 0.0
    %127 = vmatprep.subr.mxu0 0.0
    %128 = vmatpush1.xpose.msra.mxu0 0.0
    %129 = vmatprep.subr.mxu0 0.0
    %130 = vmatpush1.xpose.msra.mxu0 0.0
    %131 = vmatprep.subr.mxu0 0.0
    %v132 = vand.u32 %v23, 4294901760
    %v133 = vsub.f32 %v23, %v132
    %v134 = vand.u32 %v133, 4294901760
    %v135 = vsub.f32 %v133, %v134
    %v136 = vand.u32 %v135, 4294901760
    %137 = vmatpush1.xpose.msra.mxu0 %v136
    %138 = vmatprep.subr.mxu0 0.0
    %139 = vmatpush2.xpose.msra.mxu0 0.0
    %140 = vmatprep.subr.mxu0 0.0
    %141 = vmatpush2.xpose.msra.mxu0 0.0
    %142 = vmatprep.subr.mxu0 0.0
    %143 = vmatpush2.xpose.msra.mxu0 0.0
    %144 = vmatprep.subr.mxu0 0.0
    %145 = vmatpush2.xpose.msra.mxu0 0.0
    %146 = vmatprep.subr.mxu0 0.0
    %147 = vmatpush2.xpose.msra.mxu0 0.0
    %148 = vmatprep.subr.mxu0 0.0
    %149 = vmatpush2.xpose.msra.mxu0 0.0
    %150 = vmatprep.subr.mxu0 0.0
    %151 = vmatpush2.xpose.msra.mxu0 0.0
    %152 = vmatprep.subr.mxu0 0.0
    %153 = vmatpush2.xpose.msra.mxu0 0.0
    %154 = vmatprep.subr.mxu0 0.0
    %155 = vmatpush2.xpose.msra.mxu0 0.0
    %156 = vmatprep.subr.mxu0 0.0
    %157 = vmatpush2.xpose.msra.mxu0 0.0
    %158 = vmatprep.subr.mxu0 0.0
    %159 = vmatpush2.xpose.msra.mxu0 0.0
    %160 = vmatprep.subr.mxu0 0.0
    %161 = vmatpush2.xpose.msra.mxu0 0.0
    %162 = vmatprep.subr.mxu0 0.0
    %163 = vmatpush2.xpose.msra.mxu0 0.0
    %164 = vmatprep.subr.mxu0 0.0
    %165 = vmatpush2.xpose.msra.mxu0 0.0
    %166 = vmatprep.subr.mxu0 0.0
    %167 = vmatpush2.xpose.msra.mxu0 0.0
    %168 = vmatprep.subr.mxu0 0.0
    %169 = vmatpush2.xpose.msra.mxu0 0.0
    %170 = vmatprep.mubr.f32.mxu0 0.0
    %v171 = vand.u32 %v20, 4294901760
    %172 = vmatmul.mubr.f32.gmra.mxu0 %v171
    %v173 = vpop.f32.mrf.mxu0
    %v174 = vadd.f32 %v98, %v173
    %v175 = vpop.f32.mrf.mxu0
    %176 = vdwg.mxu0
    %177 = vmatprep.subr.mxu0 0.0
    %178 = vmatpush1.xpose.msra.mxu0 0.0
    %179 = vmatprep.subr.mxu0 0.0
    %180 = vmatpush1.xpose.msra.mxu0 0.0
    %181 = vmatprep.subr.mxu0 0.0
    %182 = vmatpush1.xpose.msra.mxu0 0.0
    %183 = vmatprep.subr.mxu0 0.0
    %184 = vmatpush1.xpose.msra.mxu0 0.0
    %185 = vmatprep.subr.mxu0 0.0
    %186 = vmatpush1.xpose.msra.mxu0 0.0
    %187 = vmatprep.subr.mxu0 0.0
    %188 = vmatpush1.xpose.msra.mxu0 0.0
    %189 = vmatprep.subr.mxu0 0.0
    %190 = vmatpush1.xpose.msra.mxu0 0.0
    %191 = vmatprep.subr.mxu0 0.0
    %192 = vmatpush1.xpose.msra.mxu0 0.0
    %193 = vmatprep.subr.mxu0 0.0
    %194 = vmatpush1.xpose.msra.mxu0 0.0
    %195 = vmatprep.subr.mxu0 0.0
    %196 = vmatpush1.xpose.msra.mxu0 0.0
    %197 = vmatprep.subr.mxu0 0.0
    %198 = vmatpush1.xpose.msra.mxu0 0.0
    %199 = vmatprep.subr.mxu0 0.0
    %200 = vmatpush1.xpose.msra.mxu0 0.0
    %201 = vmatprep.subr.mxu0 0.0
    %202 = vmatpush1.xpose.msra.mxu0 0.0
    %203 = vmatprep.subr.mxu0 0.0
    %204 = vmatpush1.xpose.msra.mxu0 0.0
    %205 = vmatprep.subr.mxu0 0.0
    %206 = vmatpush1.xpose.msra.mxu0 0.0
    %207 = vmatprep.subr.mxu0 0.0
    %v208 = vand.u32 %v23, 4294901760
    %v209 = vsub.f32 %v23, %v208
    %210 = vmatpush1.xpose.msra.mxu0 %v209
    %211 = vmatprep.subr.mxu0 0.0
    %212 = vmatpush2.xpose.msra.mxu0 0.0
    %213 = vmatprep.subr.mxu0 0.0
    %214 = vmatpush2.xpose.msra.mxu0 0.0
    %215 = vmatprep.subr.mxu0 0.0
    %216 = vmatpush2.xpose.msra.mxu0 0.0
    %217 = vmatprep.subr.mxu0 0.0
    %218 = vmatpush2.xpose.msra.mxu0 0.0
    %219 = vmatprep.subr.mxu0 0.0
    %220 = vmatpush2.xpose.msra.mxu0 0.0
    %221 = vmatprep.subr.mxu0 0.0
    %222 = vmatpush2.xpose.msra.mxu0 0.0
    %223 = vmatprep.subr.mxu0 0.0
    %224 = vmatpush2.xpose.msra.mxu0 0.0
    %225 = vmatprep.subr.mxu0 0.0
    %226 = vmatpush2.xpose.msra.mxu0 0.0
    %227 = vmatprep.subr.mxu0 0.0
    %228 = vmatpush2.xpose.msra.mxu0 0.0
    %229 = vmatprep.subr.mxu0 0.0
    %230 = vmatpush2.xpose.msra.mxu0 0.0
    %231 = vmatprep.subr.mxu0 0.0
    %232 = vmatpush2.xpose.msra.mxu0 0.0
    %233 = vmatprep.subr.mxu0 0.0
    %234 = vmatpush2.xpose.msra.mxu0 0.0
    %235 = vmatprep.subr.mxu0 0.0
    %236 = vmatpush2.xpose.msra.mxu0 0.0
    %237 = vmatprep.subr.mxu0 0.0
    %238 = vmatpush2.xpose.msra.mxu0 0.0
    %239 = vmatprep.subr.mxu0 0.0
    %240 = vmatpush2.xpose.msra.mxu0 0.0
    %241 = vmatprep.subr.mxu0 0.0
    %242 = vmatpush2.xpose.msra.mxu0 0.0
    %243 = vmatprep.mubr.f32.mxu0 0.0
    %v244 = vand.u32 %v20, 4294901760
    %v245 = vsub.f32 %v20, %v244
    %246 = vmatmul.mubr.f32.gmra.mxu0 %v245
    %v247 = vpop.f32.mrf.mxu0
    %v248 = vadd.f32 %v174, %v247
    %v249 = vpop.f32.mrf.mxu0
    %250 = vdwg.mxu0
    %251 = vmatprep.subr.mxu0 0.0
    %252 = vmatpush1.xpose.msra.mxu0 0.0
    %253 = vmatprep.subr.mxu0 0.0
    %254 = vmatpush1.xpose.msra.mxu0 0.0
    %255 = vmatprep.subr.mxu0 0.0
    %256 = vmatpush1.xpose.msra.mxu0 0.0
    %257 = vmatprep.subr.mxu0 0.0
    %258 = vmatpush1.xpose.msra.mxu0 0.0
    %259 = vmatprep.subr.mxu0 0.0
    %260 = vmatpush1.xpose.msra.mxu0 0.0
    %261 = vmatprep.subr.mxu0 0.0
    %262 = vmatpush1.xpose.msra.mxu0 0.0
    %263 = vmatprep.subr.mxu0 0.0
    %264 = vmatpush1.xpose.msra.mxu0 0.0
    %265 = vmatprep.subr.mxu0 0.0
    %266 = vmatpush1.xpose.msra.mxu0 0.0
    %267 = vmatprep.subr.mxu0 0.0
    %268 = vmatpush1.xpose.msra.mxu0 0.0
    %269 = vmatprep.subr.mxu0 0.0
    %270 = vmatpush1.xpose.msra.mxu0 0.0
    %271 = vmatprep.subr.mxu0 0.0
    %272 = vmatpush1.xpose.msra.mxu0 0.0
    %273 = vmatprep.subr.mxu0 0.0
    %274 = vmatpush1.xpose.msra.mxu0 0.0
    %275 = vmatprep.subr.mxu0 0.0
    %276 = vmatpush1.xpose.msra.mxu0 0.0
    %277 = vmatprep.subr.mxu0 0.0
    %278 = vmatpush1.xpose.msra.mxu0 0.0
    %279 = vmatprep.subr.mxu0 0.0
    %280 = vmatpush1.xpose.msra.mxu0 0.0
    %281 = vmatprep.subr.mxu0 0.0
    %v282 = vand.u32 %v23, 4294901760
    %283 = vmatpush1.xpose.msra.mxu0 %v282
    %284 = vmatprep.subr.mxu0 0.0
    %285 = vmatpush2.xpose.msra.mxu0 0.0
    %286 = vmatprep.subr.mxu0 0.0
    %287 = vmatpush2.xpose.msra.mxu0 0.0
    %288 = vmatprep.subr.mxu0 0.0
    %289 = vmatpush2.xpose.msra.mxu0 0.0
    %290 = vmatprep.subr.mxu0 0.0
    %291 = vmatpush2.xpose.msra.mxu0 0.0
    %292 = vmatprep.subr.mxu0 0.0
    %293 = vmatpush2.xpose.msra.mxu0 0.0
    %294 = vmatprep.subr.mxu0 0.0
    %295 = vmatpush2.xpose.msra.mxu0 0.0
    %296 = vmatprep.subr.mxu0 0.0
    %297 = vmatpush2.xpose.msra.mxu0 0.0
    %298 = vmatprep.subr.mxu0 0.0
    %299 = vmatpush2.xpose.msra.mxu0 0.0
    %300 = vmatprep.subr.mxu0 0.0
    %301 = vmatpush2.xpose.msra.mxu0 0.0
    %302 = vmatprep.subr.mxu0 0.0
    %303 = vmatpush2.xpose.msra.mxu0 0.0
    %304 = vmatprep.subr.mxu0 0.0
    %305 = vmatpush2.xpose.msra.mxu0 0.0
    %306 = vmatprep.subr.mxu0 0.0
    %307 = vmatpush2.xpose.msra.mxu0 0.0
    %308 = vmatprep.subr.mxu0 0.0
    %309 = vmatpush2.xpose.msra.mxu0 0.0
    %310 = vmatprep.subr.mxu0 0.0
    %311 = vmatpush2.xpose.msra.mxu0 0.0
    %312 = vmatprep.subr.mxu0 0.0
    %313 = vmatpush2.xpose.msra.mxu0 0.0
    %314 = vmatprep.subr.mxu0 0.0
    %315 = vmatpush2.xpose.msra.mxu0 0.0
    %316 = vmatprep.mubr.f32.mxu0 0.0
    %v317 = vand.u32 %v20, 4294901760
    %v318 = vsub.f32 %v20, %v317
    %v319 = vand.u32 %v318, 4294901760
    %320 = vmatmul.mubr.f32.gmra.mxu0 %v319
    %v321 = vpop.f32.mrf.mxu0
    %v322 = vadd.f32 %v248, %v321
    %v323 = vpop.f32.mrf.mxu0
    %324 = vdwg.mxu0
    %325 = vmatprep.subr.mxu0 0.0
    %326 = vmatpush1.xpose.msra.mxu0 0.0
    %327 = vmatprep.subr.mxu0 0.0
    %328 = vmatpush1.xpose.msra.mxu0 0.0
    %329 = vmatprep.subr.mxu0 0.0
    %330 = vmatpush1.xpose.msra.mxu0 0.0
    %331 = vmatprep.subr.mxu0 0.0
    %332 = vmatpush1.xpose.msra.mxu0 0.0
    %333 = vmatprep.subr.mxu0 0.0
    %334 = vmatpush1.xpose.msra.mxu0 0.0
    %335 = vmatprep.subr.mxu0 0.0
    %336 = vmatpush1.xpose.msra.mxu0 0.0
    %337 = vmatprep.subr.mxu0 0.0
    %338 = vmatpush1.xpose.msra.mxu0 0.0
    %339 = vmatprep.subr.mxu0 0.0
    %340 = vmatpush1.xpose.msra.mxu0 0.0
    %341 = vmatprep.subr.mxu0 0.0
    %342 = vmatpush1.xpose.msra.mxu0 0.0
    %343 = vmatprep.subr.mxu0 0.0
    %344 = vmatpush1.xpose.msra.mxu0 0.0
    %345 = vmatprep.subr.mxu0 0.0
    %346 = vmatpush1.xpose.msra.mxu0 0.0
    %347 = vmatprep.subr.mxu0 0.0
    %348 = vmatpush1.xpose.msra.mxu0 0.0
    %349 = vmatprep.subr.mxu0 0.0
    %350 = vmatpush1.xpose.msra.mxu0 0.0
    %351 = vmatprep.subr.mxu0 0.0
    %352 = vmatpush1.xpose.msra.mxu0 0.0
    %353 = vmatprep.subr.mxu0 0.0
    %354 = vmatpush1.xpose.msra.mxu0 0.0
    %355 = vmatprep.subr.mxu0 0.0
    %v356 = vand.u32 %v23, 4294901760
    %v357 = vsub.f32 %v23, %v356
    %v358 = vand.u32 %v357, 4294901760
    %359 = vmatpush1.xpose.msra.mxu0 %v358
    %360 = vmatprep.subr.mxu0 0.0
    %361 = vmatpush2.xpose.msra.mxu0 0.0
    %362 = vmatprep.subr.mxu0 0.0
    %363 = vmatpush2.xpose.msra.mxu0 0.0
    %364 = vmatprep.subr.mxu0 0.0
    %365 = vmatpush2.xpose.msra.mxu0 0.0
    %366 = vmatprep.subr.mxu0 0.0
    %367 = vmatpush2.xpose.msra.mxu0 0.0
    %368 = vmatprep.subr.mxu0 0.0
    %369 = vmatpush2.xpose.msra.mxu0 0.0
    %370 = vmatprep.subr.mxu0 0.0
    %371 = vmatpush2.xpose.msra.mxu0 0.0
    %372 = vmatprep.subr.mxu0 0.0
    %373 = vmatpush2.xpose.msra.mxu0 0.0
    %374 = vmatprep.subr.mxu0 0.0
    %375 = vmatpush2.xpose.msra.mxu0 0.0
    %376 = vmatprep.subr.mxu0 0.0
    %377 = vmatpush2.xpose.msra.mxu0 0.0
    %378 = vmatprep.subr.mxu0 0.0
    %379 = vmatpush2.xpose.msra.mxu0 0.0
    %380 = vmatprep.subr.mxu0 0.0
    %381 = vmatpush2.xpose.msra.mxu0 0.0
    %382 = vmatprep.subr.mxu0 0.0
    %383 = vmatpush2.xpose.msra.mxu0 0.0
    %384 = vmatprep.subr.mxu0 0.0
    %385 = vmatpush2.xpose.msra.mxu0 0.0
    %386 = vmatprep.subr.mxu0 0.0
    %387 = vmatpush2.xpose.msra.mxu0 0.0
    %388 = vmatprep.subr.mxu0 0.0
    %389 = vmatpush2.xpose.msra.mxu0 0.0
    %390 = vmatprep.subr.mxu0 0.0
    %391 = vmatpush2.xpose.msra.mxu0 0.0
    %392 = vmatprep.mubr.f32.mxu0 0.0
    %v393 = vand.u32 %v20, 4294901760
    %394 = vmatmul.mubr.f32.gmra.mxu0 %v393
    %v395 = vpop.f32.mrf.mxu0
    %v396 = vadd.f32 %v322, %v395
    %v397 = vpop.f32.mrf.mxu0
    %398 = vdwg.mxu0
    %399 = vmatprep.subr.mxu0 0.0
    %400 = vmatpush1.xpose.msra.mxu0 0.0
    %401 = vmatprep.subr.mxu0 0.0
    %402 = vmatpush1.xpose.msra.mxu0 0.0
    %403 = vmatprep.subr.mxu0 0.0
    %404 = vmatpush1.xpose.msra.mxu0 0.0
    %405 = vmatprep.subr.mxu0 0.0
    %406 = vmatpush1.xpose.msra.mxu0 0.0
    %407 = vmatprep.subr.mxu0 0.0
    %408 = vmatpush1.xpose.msra.mxu0 0.0
    %409 = vmatprep.subr.mxu0 0.0
    %410 = vmatpush1.xpose.msra.mxu0 0.0
    %411 = vmatprep.subr.mxu0 0.0
    %412 = vmatpush1.xpose.msra.mxu0 0.0
    %413 = vmatprep.subr.mxu0 0.0
    %414 = vmatpush1.xpose.msra.mxu0 0.0
    %415 = vmatprep.subr.mxu0 0.0
    %416 = vmatpush1.xpose.msra.mxu0 0.0
    %417 = vmatprep.subr.mxu0 0.0
    %418 = vmatpush1.xpose.msra.mxu0 0.0
    %419 = vmatprep.subr.mxu0 0.0
    %420 = vmatpush1.xpose.msra.mxu0 0.0
    %421 = vmatprep.subr.mxu0 0.0
    %422 = vmatpush1.xpose.msra.mxu0 0.0
    %423 = vmatprep.subr.mxu0 0.0
    %424 = vmatpush1.xpose.msra.mxu0 0.0
    %425 = vmatprep.subr.mxu0 0.0
    %426 = vmatpush1.xpose.msra.mxu0 0.0
    %427 = vmatprep.subr.mxu0 0.0
    %428 = vmatpush1.xpose.msra.mxu0 0.0
    %429 = vmatprep.subr.mxu0 0.0
    %v430 = vand.u32 %v23, 4294901760
    %431 = vmatpush1.xpose.msra.mxu0 %v430
    %432 = vmatprep.subr.mxu0 0.0
    %433 = vmatpush2.xpose.msra.mxu0 0.0
    %434 = vmatprep.subr.mxu0 0.0
    %435 = vmatpush2.xpose.msra.mxu0 0.0
    %436 = vmatprep.subr.mxu0 0.0
    %437 = vmatpush2.xpose.msra.mxu0 0.0
    %438 = vmatprep.subr.mxu0 0.0
    %439 = vmatpush2.xpose.msra.mxu0 0.0
    %440 = vmatprep.subr.mxu0 0.0
    %441 = vmatpush2.xpose.msra.mxu0 0.0
    %442 = vmatprep.subr.mxu0 0.0
    %443 = vmatpush2.xpose.msra.mxu0 0.0
    %444 = vmatprep.subr.mxu0 0.0
    %445 = vmatpush2.xpose.msra.mxu0 0.0
    %446 = vmatprep.subr.mxu0 0.0
    %447 = vmatpush2.xpose.msra.mxu0 0.0
    %448 = vmatprep.subr.mxu0 0.0
    %449 = vmatpush2.xpose.msra.mxu0 0.0
    %450 = vmatprep.subr.mxu0 0.0
    %451 = vmatpush2.xpose.msra.mxu0 0.0
    %452 = vmatprep.subr.mxu0 0.0
    %453 = vmatpush2.xpose.msra.mxu0 0.0
    %454 = vmatprep.subr.mxu0 0.0
    %455 = vmatpush2.xpose.msra.mxu0 0.0
    %456 = vmatprep.subr.mxu0 0.0
    %457 = vmatpush2.xpose.msra.mxu0 0.0
    %458 = vmatprep.subr.mxu0 0.0
    %459 = vmatpush2.xpose.msra.mxu0 0.0
    %460 = vmatprep.subr.mxu0 0.0
    %461 = vmatpush2.xpose.msra.mxu0 0.0
    %462 = vmatprep.subr.mxu0 0.0
    %463 = vmatpush2.xpose.msra.mxu0 0.0
    %464 = vmatprep.mubr.f32.mxu0 0.0
    %v465 = vand.u32 %v20, 4294901760
    %466 = vmatmul.mubr.f32.gmra.mxu0 %v465
    %v467 = vpop.f32.mrf.mxu0
    %v468 = vadd.f32 %v396, %v467
    %v469 = vpop.f32.mrf.mxu0
    %470 = vdwg.mxu0
    %s471 = sld [smem:[#allocation2]]
    %v472 = vstv %s471
    %v473 = vadd.f32 %v468, %v472
    %v474 = vsub.f32 0.0, %v473
    %v475 = vmul.f32 %v474, 1.442695
    %v476 = vpow.pop %v475
    %v477 = vadd.f32 %v476, 1.0
    %v478 = vrcp.pop %v477
    %v479 = vmul.f32 1.0, %v478
    %vm480 = vcmask 57344
    %481 = vst.msk [vmem:[#allocation3] sm:$0x1] %vm480, %v479
    // Predicated region
    $region14: #{logistic_regression_forward.1} parent=1 // pred_check
      _
    $region15: #{logistic_regression_forward.1} parent=1 // pred_check_branch
      %483 = sbr.rel (0) target = $region17
    $region16: #{logistic_regression_forward.1} parent=1 // pred_region
      %s485 = ssub.s32 16, 16
      %486 = vsyncadd [#allocation4], %s485
      %s488 = sshll.u32 [#allocation3], 4
      %s489 = int_to_ptr.vmem [resolvable:$true] %s488
      %491 = dma.vmem_to_hbm [thread:$0]  %s489, 16, %s3, [#allocation4]
    $region17: #{logistic_regression_forward.1} parent=1 // pred_fallthru
      _
    // Predicated region
    $region18: #{logistic_regression_forward.1} parent=1 // pred_check
      _
    $region19: #{logistic_regression_forward.1} parent=1 // pred_check_branch
      %493 = sbr.rel (0) target = $region21
    $region20: #{logistic_regression_forward.1} parent=1 // pred_region
      %494 = dma.done [#allocation4], 16
    $region21: #{logistic_regression_forward.1} parent=1 // pred_fallthru
      _
    %495 = vsyncpa [#allocation4], 1

</llo_original>
